<compile_context>
chip_gen: v7x
topology: tpu7x:2x2x1
jax: 0.10.0
libtpu: 0.0.40
codegen_flags: <defaults>
</compile_context>

<pallas_src>
import functools

import jax
import jax.numpy as jnp
from jax.experimental import pallas as pl
from jax.experimental.pallas import tpu as pltpu


def _combined_surv_loss_kernel(h_ref, v_ref, t_col_ref, c_col_ref, out_ref,
                               *, alpha, lambda_rank, eps):
    h = h_ref[...]                                   # (K, B) f32 logits, batch on lanes
    K, B = h.shape
    c_row = v_ref[0:1, :]                            # (1, B) censorship (1 = censored)
    t_row = v_ref[1:2, :]                            # (1, B) survival times
    y_row = v_ref[2:3, :]                            # (1, B) discrete-time label (as f32)
    t_col = t_col_ref[...]                           # (B, 1) survival times (sublane layout)
    c_col = c_col_ref[...]                           # (B, 1) censorship   (sublane layout)

    hazards = jax.nn.sigmoid(h)                      # (K, B)

    # --- NLL survival loss (lane-dense, unrolled over small static K) -------
    prod = jnp.ones((1, B), jnp.float32)             # S_padded[:, 0] == 1
    risk_sum = jnp.zeros((1, B), jnp.float32)
    s_prev = jnp.zeros((1, B), jnp.float32)
    s_this = jnp.zeros((1, B), jnp.float32)
    h_this = jnp.zeros((1, B), jnp.float32)
    for k in range(K):
        hz_k = hazards[k:k + 1, :]                   # (1, B)
        sel = (y_row == float(k))                    # (1, B) bool (y is exact small int)
        h_this = h_this + jnp.where(sel, hz_k, 0.0)
        s_prev = s_prev + jnp.where(sel, prod, 0.0)  # S_padded[:, y]
        prod = prod * (1.0 - hz_k)                   # S[:, k] == S_padded[:, k+1]
        s_this = s_this + jnp.where(sel, prod, 0.0)  # S_padded[:, y+1]
        risk_sum = risk_sum + prod                   # for risk scores

    s_prev = jnp.maximum(s_prev, eps)
    s_this = jnp.maximum(s_this, eps)
    h_this = jnp.maximum(h_this, eps)

    uncensored = -(1.0 - c_row) * (jnp.log(s_prev) + jnp.log(h_this))
    censored = -c_row * jnp.log(s_this)
    total = censored + uncensored
    total = (1.0 - alpha) * total + alpha * uncensored
    loss_nll = jnp.sum(total) / B                    # reduction='mean'

    # --- pairwise rank loss (fused VPU/XLU masked reduce, no MXU) ------------
    risk_row = -risk_sum                             # (1, B) risk scores = -sum(S)
    m = jnp.max(risk_row)                            # global max for stable logsumexp
    exp_risk_row = jnp.exp(risk_row - m)             # (1, B), values in (0, 1]

    # pair_mask[i, j] = (t[j] > t[i]);  i on sublanes, j on lanes.
    t_i = jnp.broadcast_to(t_col, (B, B))
    t_j = jnp.broadcast_to(t_row, (B, B))
    pair_mask = t_j > t_i                            # (B, B) bool, never cast to f32

    # se[i] = sum_{j: t[j] > t[i]} exp(risk[j] - m)   (single O(B^2) pass)
    se_col = jnp.sum(
        jnp.where(pair_mask, jnp.broadcast_to(exp_risk_row, (B, B)), 0.0),
        axis=1, keepdims=True)                       # (B, 1)

    # "exists j with t[j] > t[i]"  <=>  t[i] < max(t)   (O(B), no mask count)
    t_max = jnp.max(t_row)
    valid_col = jnp.logical_and(c_col == 0.0, t_col < t_max)   # (B, 1)
    se_safe = jnp.where(valid_col, se_col, 1.0)      # guard log() for invalid rows
    lse_col = m + jnp.log(se_safe)                   # (B, 1)
    sum_valid_lse = jnp.sum(jnp.where(valid_col, lse_col, 0.0))

    valid_row = jnp.logical_and(c_row == 0.0, t_row < t_max)   # (1, B)
    sum_valid_risk = jnp.sum(jnp.where(valid_row, risk_row, 0.0))
    count = jnp.sum(valid_row.astype(jnp.float32))

    denom = jnp.maximum(count, 1.0)                  # guard divide-by-zero
    loss_rank = jnp.where(count > 0.0,
                          (sum_valid_lse - sum_valid_risk) / denom, 0.0)

    out_ref[0, 0] = loss_nll + lambda_rank * loss_rank


def combined_surv_loss(outputs, y, t, c, alpha=0.0, lambda_rank=0.5, eps=1e-7):
    """Pallas TPU implementation of CombinedSurvLoss.forward (reduction='mean')."""
    B, K = outputs.shape
    h_kb = jnp.transpose(outputs.astype(jnp.float32))          # (K, B): batch on lanes
    packed = jnp.stack([c.astype(jnp.float32),
                        t.astype(jnp.float32),
                        y.astype(jnp.float32)], axis=0)         # (3, B)
    t_col = t.astype(jnp.float32).reshape(B, 1)                 # sublane layout for pair mask
    c_col = c.astype(jnp.float32).reshape(B, 1)

    kernel = functools.partial(
        _combined_surv_loss_kernel,
        alpha=float(alpha), lambda_rank=float(lambda_rank), eps=float(eps))

    # Advisory cost estimate: rank term dominates at O(B^2).
    cost = pl.CostEstimate(
        flops=int(3 * B * B + 10 * B * K + 16 * B),
        transcendentals=int(B * K + 6 * B),
        bytes_accessed=int(4 * (K * B + 3 * B + 2 * B + 1)))

    # Single-block VMEM budget: (B,B) bool mask + (B,B) f32 select temp + inputs.
    vmem_needed = 8 * B * B + 4 * (K + 16) * B + (1 << 20)
    vmem_limit = int(min(max(vmem_needed, 32 * 1024 * 1024), 64 * 1024 * 1024))

    out = pl.pallas_call(
        kernel,
        out_shape=jax.ShapeDtypeStruct((1, 1), jnp.float32),
        in_specs=[pl.BlockSpec(memory_space=pltpu.MemorySpace.VMEM)] * 4,
        out_specs=pl.BlockSpec(memory_space=pltpu.MemorySpace.SMEM),
        compiler_params=pltpu.CompilerParams(vmem_limit_bytes=vmem_limit),
        cost_estimate=cost,
    )(h_kb, packed, t_col, c_col)
    return out[0, 0]


def reference_loss(outputs, y, t, c, alpha=0.0, lambda_rank=0.5, eps=1e-7):
    """Pure-JAX (host control-flow) mirror of the PyTorch module, for checking."""
    h = outputs.astype(jnp.float32)
    B, K = h.shape
    hazards = jax.nn.sigmoid(h)
    S = jnp.cumprod(1.0 - hazards, axis=1)
    S_pad = jnp.concatenate([jnp.ones((B, 1), jnp.float32), S], axis=1)
    yi = y.astype(jnp.int32)
    rows = jnp.arange(B)
    s_prev = jnp.maximum(S_pad[rows, yi], eps)
    h_this = jnp.maximum(hazards[rows, yi], eps)
    s_this = jnp.maximum(S_pad[rows, yi + 1], eps)
    cf = c.astype(jnp.float32)
    unc = -(1.0 - cf) * (jnp.log(s_prev) + jnp.log(h_this))
    cen = -cf * jnp.log(s_this)
    total = cen + unc
    total = (1.0 - alpha) * total + alpha * unc
    nll = jnp.mean(total)

    risk = -jnp.sum(S, axis=1)
    fc = (cf == 0)
    loss = 0.0
    count = 0
    for i in range(B):
        if bool(fc[i]):
            rel = jnp.where(t > t[i])[0]
            if rel.size > 0:
                loss = loss + (jax.scipy.special.logsumexp(risk[rel]) - risk[i])
                count += 1
    rank = loss / count if count > 0 else jnp.float32(0.0)
    return nll + lambda_rank * rank


if __name__ == "__main__":
    key = jax.random.PRNGKey(0)
    k1, k2, k3, k4 = jax.random.split(key, 4)

    B, K = 8, 4
    outputs = jax.random.normal(k1, (B, K), jnp.float32)
    y = jax.random.randint(k2, (B,), 0, K)                     # discrete-time labels
    t = jax.random.uniform(k3, (B,), jnp.float32, 0.5, 10.0)   # survival times
    c = jax.random.randint(k4, (B,), 0, 2)                     # censorship (0/1)

    loss = combined_surv_loss(outputs, y, t, c, alpha=0.0, lambda_rank=0.5, eps=1e-7)
    loss = jax.block_until_ready(loss)

    ref = reference_loss(outputs, y, t, c, alpha=0.0, lambda_rank=0.5, eps=1e-7)
    assert jnp.isfinite(loss), "kernel produced non-finite loss"
    assert abs(float(loss) - float(ref)) < 2e-3, (float(loss), float(ref))

    print("KERNEL_OK")
</pallas_src>

<mosaic_0001>
module attributes {stable_mosaic.version = 11 : i64} {
  func.func @_combined_surv_loss_kernel(%arg0: memref<4x8xf32, #tpu.memory_space<vmem>>, %arg1: memref<3x8xf32, #tpu.memory_space<vmem>>, %arg2: memref<8x1xf32, #tpu.memory_space<vmem>>, %arg3: memref<8x1xf32, #tpu.memory_space<vmem>>, %arg4: memref<1x1xf32, #tpu.memory_space<smem>>) attributes {dimension_semantics = [], scalar_prefetch = 0 : i64, scratch_operands = 0 : i64, tpu.core_type = #tpu.core_type<tc>} {
    %c0 = arith.constant 0 : index
    %c0_0 = arith.constant 0 : index
    %0 = vector.load %arg0[%c0, %c0_0] : memref<4x8xf32, #tpu.memory_space<vmem>>, vector<4x8xf32>
    %c0_1 = arith.constant 0 : index
    %c0_2 = arith.constant 0 : index
    %1 = vector.load %arg1[%c0_1, %c0_2] : memref<3x8xf32, #tpu.memory_space<vmem>>, vector<1x8xf32>
    %c1 = arith.constant 1 : index
    %c0_3 = arith.constant 0 : index
    %2 = vector.load %arg1[%c1, %c0_3] : memref<3x8xf32, #tpu.memory_space<vmem>>, vector<1x8xf32>
    %c2 = arith.constant 2 : index
    %c0_4 = arith.constant 0 : index
    %3 = vector.load %arg1[%c2, %c0_4] : memref<3x8xf32, #tpu.memory_space<vmem>>, vector<1x8xf32>
    %c0_5 = arith.constant 0 : index
    %c0_6 = arith.constant 0 : index
    %4 = vector.load %arg2[%c0_5, %c0_6] : memref<8x1xf32, #tpu.memory_space<vmem>>, vector<8x1xf32>
    %c0_7 = arith.constant 0 : index
    %c0_8 = arith.constant 0 : index
    %5 = vector.load %arg3[%c0_7, %c0_8] : memref<8x1xf32, #tpu.memory_space<vmem>>, vector<8x1xf32>
    %6 = arith.negf %0 : vector<4x8xf32>
    %7 = math.exp %6 : vector<4x8xf32>
    %cst = arith.constant 1.000000e+00 : f32
    %8 = vector.broadcast %cst : f32 to vector<4x8xf32>
    %9 = arith.addf %8, %7 : vector<4x8xf32>
    %10 = arith.divf %8, %9 : vector<4x8xf32>
    %cst_9 = arith.constant 1.000000e+00 : f32
    %11 = vector.broadcast %cst_9 : f32 to vector<1x8xf32>
    %cst_10 = arith.constant 0.000000e+00 : f32
    %12 = vector.broadcast %cst_10 : f32 to vector<1x8xf32>
    %cst_11 = arith.constant 0.000000e+00 : f32
    %13 = vector.broadcast %cst_11 : f32 to vector<1x8xf32>
    %cst_12 = arith.constant 0.000000e+00 : f32
    %14 = vector.broadcast %cst_12 : f32 to vector<1x8xf32>
    %cst_13 = arith.constant 0.000000e+00 : f32
    %15 = vector.broadcast %cst_13 : f32 to vector<1x8xf32>
    %16 = vector.extract_strided_slice %10 {offsets = [0, 0], sizes = [1, 8], strides = [1, 1]} : vector<4x8xf32> to vector<1x8xf32>
    %cst_14 = arith.constant 0.000000e+00 : f32
    %17 = vector.broadcast %cst_14 : f32 to vector<1x8xf32>
    %18 = arith.cmpf oeq, %3, %17 : vector<1x8xf32>
    %cst_15 = arith.constant 0.000000e+00 : f32
    %19 = vector.broadcast %cst_15 : f32 to vector<1x8xf32>
    %20 = arith.select %18, %16, %19 : vector<1x8xi1>, vector<1x8xf32>
    %21 = arith.addf %15, %20 : vector<1x8xf32>
    %cst_16 = arith.constant 0.000000e+00 : f32
    %22 = vector.broadcast %cst_16 : f32 to vector<1x8xf32>
    %23 = arith.select %18, %11, %22 : vector<1x8xi1>, vector<1x8xf32>
    %24 = arith.addf %13, %23 : vector<1x8xf32>
    %cst_17 = arith.constant 1.000000e+00 : f32
    %25 = vector.broadcast %cst_17 : f32 to vector<1x8xf32>
    %26 = arith.subf %25, %16 : vector<1x8xf32>
    %27 = arith.mulf %11, %26 : vector<1x8xf32>
    %cst_18 = arith.constant 0.000000e+00 : f32
    %28 = vector.broadcast %cst_18 : f32 to vector<1x8xf32>
    %29 = arith.select %18, %27, %28 : vector<1x8xi1>, vector<1x8xf32>
    %30 = arith.addf %14, %29 : vector<1x8xf32>
    %31 = arith.addf %12, %27 : vector<1x8xf32>
    %32 = vector.extract_strided_slice %10 {offsets = [1, 0], sizes = [1, 8], strides = [1, 1]} : vector<4x8xf32> to vector<1x8xf32>
    %cst_19 = arith.constant 1.000000e+00 : f32
    %33 = vector.broadcast %cst_19 : f32 to vector<1x8xf32>
    %34 = arith.cmpf oeq, %3, %33 : vector<1x8xf32>
    %cst_20 = arith.constant 0.000000e+00 : f32
    %35 = vector.broadcast %cst_20 : f32 to vector<1x8xf32>
    %36 = arith.select %34, %32, %35 : vector<1x8xi1>, vector<1x8xf32>
    %37 = arith.addf %21, %36 : vector<1x8xf32>
    %cst_21 = arith.constant 0.000000e+00 : f32
    %38 = vector.broadcast %cst_21 : f32 to vector<1x8xf32>
    %39 = arith.select %34, %27, %38 : vector<1x8xi1>, vector<1x8xf32>
    %40 = arith.addf %24, %39 : vector<1x8xf32>
    %cst_22 = arith.constant 1.000000e+00 : f32
    %41 = vector.broadcast %cst_22 : f32 to vector<1x8xf32>
    %42 = arith.subf %41, %32 : vector<1x8xf32>
    %43 = arith.mulf %27, %42 : vector<1x8xf32>
    %cst_23 = arith.constant 0.000000e+00 : f32
    %44 = vector.broadcast %cst_23 : f32 to vector<1x8xf32>
    %45 = arith.select %34, %43, %44 : vector<1x8xi1>, vector<1x8xf32>
    %46 = arith.addf %30, %45 : vector<1x8xf32>
    %47 = arith.addf %31, %43 : vector<1x8xf32>
    %48 = vector.extract_strided_slice %10 {offsets = [2, 0], sizes = [1, 8], strides = [1, 1]} : vector<4x8xf32> to vector<1x8xf32>
    %cst_24 = arith.constant 2.000000e+00 : f32
    %49 = vector.broadcast %cst_24 : f32 to vector<1x8xf32>
    %50 = arith.cmpf oeq, %3, %49 : vector<1x8xf32>
    %cst_25 = arith.constant 0.000000e+00 : f32
    %51 = vector.broadcast %cst_25 : f32 to vector<1x8xf32>
    %52 = arith.select %50, %48, %51 : vector<1x8xi1>, vector<1x8xf32>
    %53 = arith.addf %37, %52 : vector<1x8xf32>
    %cst_26 = arith.constant 0.000000e+00 : f32
    %54 = vector.broadcast %cst_26 : f32 to vector<1x8xf32>
    %55 = arith.select %50, %43, %54 : vector<1x8xi1>, vector<1x8xf32>
    %56 = arith.addf %40, %55 : vector<1x8xf32>
    %cst_27 = arith.constant 1.000000e+00 : f32
    %57 = vector.broadcast %cst_27 : f32 to vector<1x8xf32>
    %58 = arith.subf %57, %48 : vector<1x8xf32>
    %59 = arith.mulf %43, %58 : vector<1x8xf32>
    %cst_28 = arith.constant 0.000000e+00 : f32
    %60 = vector.broadcast %cst_28 : f32 to vector<1x8xf32>
    %61 = arith.select %50, %59, %60 : vector<1x8xi1>, vector<1x8xf32>
    %62 = arith.addf %46, %61 : vector<1x8xf32>
    %63 = arith.addf %47, %59 : vector<1x8xf32>
    %64 = vector.extract_strided_slice %10 {offsets = [3, 0], sizes = [1, 8], strides = [1, 1]} : vector<4x8xf32> to vector<1x8xf32>
    %cst_29 = arith.constant 3.000000e+00 : f32
    %65 = vector.broadcast %cst_29 : f32 to vector<1x8xf32>
    %66 = arith.cmpf oeq, %3, %65 : vector<1x8xf32>
    %cst_30 = arith.constant 0.000000e+00 : f32
    %67 = vector.broadcast %cst_30 : f32 to vector<1x8xf32>
    %68 = arith.select %66, %64, %67 : vector<1x8xi1>, vector<1x8xf32>
    %69 = arith.addf %53, %68 : vector<1x8xf32>
    %cst_31 = arith.constant 0.000000e+00 : f32
    %70 = vector.broadcast %cst_31 : f32 to vector<1x8xf32>
    %71 = arith.select %66, %59, %70 : vector<1x8xi1>, vector<1x8xf32>
    %72 = arith.addf %56, %71 : vector<1x8xf32>
    %cst_32 = arith.constant 1.000000e+00 : f32
    %73 = vector.broadcast %cst_32 : f32 to vector<1x8xf32>
    %74 = arith.subf %73, %64 : vector<1x8xf32>
    %75 = arith.mulf %59, %74 : vector<1x8xf32>
    %cst_33 = arith.constant 0.000000e+00 : f32
    %76 = vector.broadcast %cst_33 : f32 to vector<1x8xf32>
    %77 = arith.select %66, %75, %76 : vector<1x8xi1>, vector<1x8xf32>
    %78 = arith.addf %62, %77 : vector<1x8xf32>
    %79 = arith.addf %63, %75 : vector<1x8xf32>
    %cst_34 = arith.constant 1.000000e-07 : f32
    %80 = vector.broadcast %cst_34 : f32 to vector<1x8xf32>
    %81 = arith.maximumf %72, %80 : vector<1x8xf32>
    %cst_35 = arith.constant 1.000000e-07 : f32
    %82 = vector.broadcast %cst_35 : f32 to vector<1x8xf32>
    %83 = arith.maximumf %78, %82 : vector<1x8xf32>
    %cst_36 = arith.constant 1.000000e-07 : f32
    %84 = vector.broadcast %cst_36 : f32 to vector<1x8xf32>
    %85 = arith.maximumf %69, %84 : vector<1x8xf32>
    %cst_37 = arith.constant 1.000000e+00 : f32
    %86 = vector.broadcast %cst_37 : f32 to vector<1x8xf32>
    %87 = arith.subf %86, %1 : vector<1x8xf32>
    %cst_38 = arith.constant 0.000000e+00 : f32
    %88 = vector.broadcast %cst_38 : f32 to vector<1x8xf32>
    %89 = arith.subf %88, %87 : vector<1x8xf32>
    %90 = math.log %81 : vector<1x8xf32>
    %91 = math.log %85 : vector<1x8xf32>
    %92 = arith.addf %90, %91 : vector<1x8xf32>
    %93 = arith.mulf %89, %92 : vector<1x8xf32>
    %cst_39 = arith.constant 0.000000e+00 : f32
    %94 = vector.broadcast %cst_39 : f32 to vector<1x8xf32>
    %95 = arith.subf %94, %1 : vector<1x8xf32>
    %96 = math.log %83 : vector<1x8xf32>
    %97 = arith.mulf %95, %96 : vector<1x8xf32>
    %98 = arith.addf %97, %93 : vector<1x8xf32>
    %cst_40 = arith.constant 1.000000e+00 : f32
    %99 = vector.broadcast %cst_40 : f32 to vector<1x8xf32>
    %100 = arith.mulf %99, %98 : vector<1x8xf32>
    %cst_41 = arith.constant 0.000000e+00 : f32
    %101 = vector.broadcast %cst_41 : f32 to vector<1x8xf32>
    %102 = arith.mulf %101, %93 : vector<1x8xf32>
    %103 = arith.addf %100, %102 : vector<1x8xf32>
    %104 = vector.shape_cast %103 : vector<1x8xf32> to vector<1x1x8xf32>
    %cst_42 = arith.constant dense<0.000000e+00> : vector<1xf32>
    %105 = vector.multi_reduction <add>, %104, %cst_42 [1, 2] : vector<1x1x8xf32> to vector<1xf32>
    %106 = vector.shape_cast %105 : vector<1xf32> to vector<1x1x1xf32>
    %107 = vector.extract %106[0, 0, 0] : f32 from vector<1x1x1xf32>
    %cst_43 = arith.constant 8.000000e+00 : f32
    %108 = arith.divf %107, %cst_43 : f32
    %cst_44 = arith.constant 0.000000e+00 : f32
    %109 = vector.broadcast %cst_44 : f32 to vector<1x8xf32>
    %110 = arith.subf %109, %79 : vector<1x8xf32>
    %111 = vector.shape_cast %110 : vector<1x8xf32> to vector<1x1x8xf32>
    %cst_45 = arith.constant dense<0xFF800000> : vector<1xf32>
    %112 = vector.multi_reduction <maximumf>, %111, %cst_45 [1, 2] : vector<1x1x8xf32> to vector<1xf32>
    %113 = vector.shape_cast %112 : vector<1xf32> to vector<1x1x1xf32>
    %114 = vector.extract %113[0, 0, 0] : f32 from vector<1x1x1xf32>
    %115 = vector.broadcast %114 : f32 to vector<1x8xf32>
    %116 = arith.subf %110, %115 : vector<1x8xf32>
    %117 = math.exp %116 : vector<1x8xf32>
    %118 = vector.shape_cast %4 : vector<8x1xf32> to vector<8x1xf32>
    %119 = vector.broadcast %118 : vector<8x1xf32> to vector<8x8xf32>
    %120 = vector.shape_cast %2 : vector<1x8xf32> to vector<1x8xf32>
    %121 = vector.broadcast %120 : vector<1x8xf32> to vector<8x8xf32>
    %122 = arith.cmpf ogt, %121, %119 : vector<8x8xf32>
    %123 = vector.shape_cast %117 : vector<1x8xf32> to vector<1x8xf32>
    %124 = vector.broadcast %123 : vector<1x8xf32> to vector<8x8xf32>
    %cst_46 = arith.constant 0.000000e+00 : f32
    %125 = vector.broadcast %cst_46 : f32 to vector<8x8xf32>
    %126 = arith.select %122, %124, %125 : vector<8x8xi1>, vector<8x8xf32>
    %cst_47 = arith.constant dense<0.000000e+00> : vector<8xf32>
    %127 = vector.multi_reduction <add>, %126, %cst_47 [1] : vector<8x8xf32> to vector<8xf32>
    %128 = vector.shape_cast %127 : vector<8xf32> to vector<8x1xf32>
    %129 = vector.shape_cast %2 : vector<1x8xf32> to vector<1x1x8xf32>
    %cst_48 = arith.constant dense<0xFF800000> : vector<1xf32>
    %130 = vector.multi_reduction <maximumf>, %129, %cst_48 [1, 2] : vector<1x1x8xf32> to vector<1xf32>
    %131 = vector.shape_cast %130 : vector<1xf32> to vector<1x1x1xf32>
    %132 = vector.extract %131[0, 0, 0] : f32 from vector<1x1x1xf32>
    %cst_49 = arith.constant 0.000000e+00 : f32
    %133 = vector.broadcast %cst_49 : f32 to vector<8x1xf32>
    %134 = arith.cmpf oeq, %5, %133 : vector<8x1xf32>
    %135 = vector.broadcast %132 : f32 to vector<8x1xf32>
    %136 = arith.cmpf olt, %4, %135 : vector<8x1xf32>
    %137 = arith.andi %134, %136 : vector<8x1xi1>
    %cst_50 = arith.constant 1.000000e+00 : f32
    %138 = vector.broadcast %cst_50 : f32 to vector<8x1xf32>
    %139 = arith.select %137, %128, %138 : vector<8x1xi1>, vector<8x1xf32>
    %140 = math.log %139 : vector<8x1xf32>
    %141 = vector.broadcast %114 : f32 to vector<8x1xf32>
    %142 = arith.addf %141, %140 : vector<8x1xf32>
    %cst_51 = arith.constant 0.000000e+00 : f32
    %143 = vector.broadcast %cst_51 : f32 to vector<8x1xf32>
    %144 = arith.select %137, %142, %143 : vector<8x1xi1>, vector<8x1xf32>
    %145 = vector.shape_cast %144 : vector<8x1xf32> to vector<1x8x1xf32>
    %cst_52 = arith.constant dense<0.000000e+00> : vector<1xf32>
    %146 = vector.multi_reduction <add>, %145, %cst_52 [1, 2] : vector<1x8x1xf32> to vector<1xf32>
    %147 = vector.shape_cast %146 : vector<1xf32> to vector<1x1x1xf32>
    %148 = vector.extract %147[0, 0, 0] : f32 from vector<1x1x1xf32>
    %cst_53 = arith.constant 0.000000e+00 : f32
    %149 = vector.broadcast %cst_53 : f32 to vector<1x8xf32>
    %150 = arith.cmpf oeq, %1, %149 : vector<1x8xf32>
    %151 = vector.broadcast %132 : f32 to vector<1x8xf32>
    %152 = arith.cmpf olt, %2, %151 : vector<1x8xf32>
    %153 = arith.andi %150, %152 : vector<1x8xi1>
    %cst_54 = arith.constant 0.000000e+00 : f32
    %154 = vector.broadcast %cst_54 : f32 to vector<1x8xf32>
    %155 = arith.select %153, %110, %154 : vector<1x8xi1>, vector<1x8xf32>
    %156 = vector.shape_cast %155 : vector<1x8xf32> to vector<1x1x8xf32>
    %cst_55 = arith.constant dense<0.000000e+00> : vector<1xf32>
    %157 = vector.multi_reduction <add>, %156, %cst_55 [1, 2] : vector<1x1x8xf32> to vector<1xf32>
    %158 = vector.shape_cast %157 : vector<1xf32> to vector<1x1x1xf32>
    %159 = vector.extract %158[0, 0, 0] : f32 from vector<1x1x1xf32>
    %160 = arith.extui %153 : vector<1x8xi1> to vector<1x8xi32>
    %161 = arith.sitofp %160 : vector<1x8xi32> to vector<1x8xf32>
    %162 = vector.shape_cast %161 : vector<1x8xf32> to vector<1x1x8xf32>
    %cst_56 = arith.constant dense<0.000000e+00> : vector<1xf32>
    %163 = vector.multi_reduction <add>, %162, %cst_56 [1, 2] : vector<1x1x8xf32> to vector<1xf32>
    %164 = vector.shape_cast %163 : vector<1xf32> to vector<1x1x1xf32>
    %165 = vector.extract %164[0, 0, 0] : f32 from vector<1x1x1xf32>
    %cst_57 = arith.constant 1.000000e+00 : f32
    %166 = arith.maximumf %165, %cst_57 : f32
    %cst_58 = arith.constant 0.000000e+00 : f32
    %167 = arith.cmpf ogt, %165, %cst_58 : f32
    %168 = arith.subf %148, %159 : f32
    %169 = arith.divf %168, %166 : f32
    %cst_59 = arith.constant 0.000000e+00 : f32
    %170 = arith.select %167, %169, %cst_59 : f32
    %cst_60 = arith.constant 5.000000e-01 : f32
    %171 = arith.mulf %cst_60, %170 : f32
    %172 = arith.addf %108, %171 : f32
    %c0_61 = arith.constant 0 : index
    %c0_62 = arith.constant 0 : index
    %173 = memref.load %arg4[%c0_61, %c0_62] : memref<1x1xf32, #tpu.memory_space<smem>>
    memref.store %172, %arg4[%c0_61, %c0_62] : memref<1x1xf32, #tpu.memory_space<smem>>
    return
  }
}

</mosaic_0001>

<llo_original>
// kernel: tpu_custom_call.1
$region0: #{tpu_custom_call.1}
  #allocation0 [shape = 'u32[]', space=smem, size = 0x4, offset = 0x4, fixed_abs, tag = 'smem constant byte address 0x4 - core index']
  #allocation1 [shape = 'u32[144,128]{1,0:T(1,128)}', space=vmem, size = 0x12000, scoped, tag = 'internal scratch']
  %s0 = inlined_call_operand.vmem [shape: f32[4,8], index: 0, kind: input, shape index: {}]
  %s1 = inlined_call_operand.vmem [shape: f32[3,8], index: 1, kind: input, shape index: {}]
  %s2 = inlined_call_operand.vmem [shape: f32[8,1], index: 2, kind: input, shape index: {}]
  %s3 = inlined_call_operand.vmem [shape: f32[8,1], index: 3, kind: input, shape index: {}]
  %s4 = inlined_call_operand.hbm [shape: f32[1,1], index: 4, kind: output, shape index: {}]
  %s5 = sld [smem:[#allocation0]]
  $region26: #{tpu_custom_call.1} parent=0
    _
  %s7 = ssub.s32 1, %s5
  %s8 = scalar_select 0, %s7, %s5
  $region1: #{tpu_custom_call.1} parent=0
    #allocation2 [shape = 'u8[512]{0}', space=smem, size = 0x200, scoped, tag = 'output window, operand 0, single buffered']
    #allocation3 [shape = 's32[1]{0}', space=sflag, size = 0x4, scoped, tag = 'scoped memory for tpu_custom_call.1']
    %9 = vsyncpa [#allocation3], 0
    // Predicated region
    $region2: #{tpu_custom_call.1} parent=1 // pred_check
      _
    $region3: #{tpu_custom_call.1} parent=1 // pred_check_branch
      %11 = sbr.rel (0) target = $region5
    $region4: #{tpu_custom_call.1} parent=1 // pred_region
      _
    $region5: #{tpu_custom_call.1} parent=1 // pred_fallthru
      _
    // Predicated region
    $region6: #{tpu_custom_call.1} parent=1 // pred_check
      _
    $region7: #{tpu_custom_call.1} parent=1 // pred_check_branch
      %13 = sbr.rel (0) target = $region9
    $region8: #{tpu_custom_call.1} parent=1 // pred_region
      _
    $region9: #{tpu_custom_call.1} parent=1 // pred_fallthru
      _
    // Predicated region
    $region10: #{tpu_custom_call.1} parent=1 // pred_check
      _
    $region11: #{tpu_custom_call.1} parent=1 // pred_check_branch
      %15 = sbr.rel (0) target = $region13
    $region12: #{tpu_custom_call.1} parent=1 // pred_region
      _
    $region13: #{tpu_custom_call.1} parent=1 // pred_fallthru
      _
    // Predicated region
    $region14: #{tpu_custom_call.1} parent=1 // pred_check
      _
    $region15: #{tpu_custom_call.1} parent=1 // pred_check_branch
      %17 = sbr.rel (0) target = $region17
    $region16: #{tpu_custom_call.1} parent=1 // pred_region
      _
    $region17: #{tpu_custom_call.1} parent=1 // pred_fallthru
      _
    %v18 = vld [vmem:[%s0] sm:$0xf]
    %v19 = vld [vmem:[%s1] sm:$0x1]
    %v20 = vld [vmem:[%s1 + $0x1] sm:$0x1]
    %v21 = vld [vmem:[%s1 + $0x2] sm:$0x1]
    %v22 = vld [vmem:[%s2] sm:$0xff]
    %v23 = vld [vmem:[%s3] sm:$0xff]
    %v24 = vxor.u32 %v18, 2147483648
    %v25 = vmul.f32 %v24, 1.442695
    %v26 = vpow.pop %v25
    %v27 = vadd.f32 %v26, 1.0
    %v28 = vrcp.pop %v27
    %v29 = vmul.f32 1.0, %v28
    %vm30 = vcmp.eq.f32.partialorder %v21, 0.0
    %v31 = vsel %vm30, %v29, 0.0
    %v32 = vadd.f32 %v31, 0.0
    %v33 = vsel %vm30, 1.0, 0.0
    %v34 = vadd.f32 %v33, 0.0
    %v35 = vsub.f32 1.0, %v29
    %v36 = vsel %vm30, %v35, 0.0
    %v37 = vadd.f32 %v36, 0.0
    %v38 = vadd.f32 %v35, 0.0
    %vm39 = vcmp.eq.f32.partialorder %v21, 1.0
    %v41 = vrot.slane %v29, 1
    %v43 = vsel %vm39, %v41, 0.0
    %v44 = vadd.f32 %v32, %v43
    %v45 = vsel %vm39, %v35, 0.0
    %v46 = vadd.f32 %v34, %v45
    %v48 = vrot.slane %v35, 1
    %v50 = vmul.f32 %v35, %v48
    %v51 = vsel %vm39, %v50, 0.0
    %v52 = vadd.f32 %v37, %v51
    %v53 = vadd.f32 %v38, %v50
    %vm54 = vcmp.eq.f32.partialorder %v21, 2.0
    %v55 = vrot.slane %v29, 2
    %v57 = vsel %vm54, %v55, 0.0
    %v58 = vadd.f32 %v44, %v57
    %v59 = vsel %vm54, %v50, 0.0
    %v60 = vadd.f32 %v46, %v59
    %v61 = vrot.slane %v35, 2
    %v63 = vmul.f32 %v50, %v61
    %v64 = vsel %vm54, %v63, 0.0
    %v65 = vadd.f32 %v52, %v64
    %v66 = vadd.f32 %v53, %v63
    %vm67 = vcmp.eq.f32.partialorder %v21, 3.0
    %v68 = vrot.slane %v29, 3
    %v70 = vsel %vm67, %v68, 0.0
    %v71 = vadd.f32 %v58, %v70
    %v72 = vsel %vm67, %v63, 0.0
    %v73 = vadd.f32 %v60, %v72
    %v74 = vrot.slane %v35, 3
    %v76 = vmul.f32 %v63, %v74
    %v77 = vsel %vm67, %v76, 0.0
    %v78 = vadd.f32 %v65, %v77
    %v79 = vadd.f32 %v66, %v76
    %v80 = vmax.f32 %v73, 1e-07
    %v81 = vmax.f32 %v78, 1e-07
    %v82 = vmax.f32 %v71, 1e-07
    %v83 = vsub.f32 1.0, %v19
    %v84 = vsub.f32 0.0, %v83
    %v85 = vlog2.pop %v80
    %v86 = vmul.f32 %v85, 0.6931472
    %v87 = vlog2.pop %v82
    %v88 = vmul.f32 %v87, 0.6931472
    %v89 = vadd.f32 %v86, %v88
    %v90 = vmul.f32 %v84, %v89
    %v91 = vsub.f32 0.0, %v19
    %v92 = vlog2.pop %v81
    %v93 = vmul.f32 %v92, 0.6931472
    %v94 = vmul.f32 %v91, %v93
    %v95 = vadd.f32 %v94, %v90
    %v96 = vmul.f32 %v90, 0.0
    %v97 = vadd.f32 %v95, %v96
    %vm98 = vcmask 57344
    %v99 = vsel %vm98, %v97, 0.0
    %100 = vadd.xlane.f32.xlu0 %v99
    %v101 = vpop.xlane.xlu0 %100
    %v102 = vrot.slane %v101, 4
    %v103 = vadd.f32 %v101, %v102
    %v104 = vrot.slane %v103, 2
    %v105 = vadd.f32 %v103, %v104
    %v106 = vrot.slane %v105, 1
    %v107 = vadd.f32 %v105, %v106
    %s108 = vtos %v107
    %v109 = vrcp.pop 8.0
    %s110 = vtos %v109
    %s111 = smul.f32 %s108, %s110
    %v112 = vsub.f32 0.0, %v79
    %v113 = vsel %vm98, %v112, -inf
    %114 = vmax.xlane.f32.xlu0 %v113
    %v115 = vpop.xlane.xlu0 %114
    %v116 = vrot.slane %v115, 4
    %v117 = vmax.f32 %v115, %v116
    %v118 = vrot.slane %v117, 2
    %v119 = vmax.f32 %v117, %v118
    %v120 = vrot.slane %v119, 1
    %v121 = vmax.f32 %v119, %v120
    %s122 = vtos %v121
    %v123 = vstv %s122
    %v124 = vsub.f32 %v112, %v123
    %v125 = vmul.f32 %v124, 1.442695
    %v126 = vpow.pop %v125
    %128 = vset.pattern.permute.xlu0 0
    %129 = vperm.xlu0 %128, %v22
    %v130 = vpop.permute.xlu0 %129
    %v132 = vlaneseq
    %v133 = vshrl.u32 %v132, 7
    %v134 = vsub.s32 0, %v133
    %v135 = vrot.slane %v20, %v134
    %vm136 = vcmp.gt.f32.partialorder %v135, %v130
    %v137 = vlaneseq
    %v138 = vshrl.u32 %v137, 7
    %v139 = vsub.s32 0, %v138
    %v140 = vrot.slane %v126, %v139
    %v141 = vsel %vm136, %v140, 0.0
    %vm142 = vcmask 64512
    %v143 = vsel %vm142, %v141, 0.0
    %144 = vadd.xlane.f32.xlu0 %v143
    %v145 = vpop.xlane.xlu0 %144
    %v146 = vsel %vm98, %v20, -inf
    %147 = vmax.xlane.f32.xlu0 %v146
    %v148 = vpop.xlane.xlu0 %147
    %v149 = vrot.slane %v148, 4
    %v150 = vmax.f32 %v148, %v149
    %v151 = vrot.slane %v150, 2
    %v152 = vmax.f32 %v150, %v151
    %v153 = vrot.slane %v152, 1
    %v154 = vmax.f32 %v152, %v153
    %s155 = vtos %v154
    %vm156 = vcmp.eq.f32.partialorder %v23, 0.0
    %v157 = vstv %s155
    %vm158 = vcmp.lt.f32.partialorder %v22, %v157
    %vm159 = vmand %vm156, %vm158
    %v160 = vsel %vm159, %v145, 1.0
    %v161 = vlog2.pop %v160
    %v162 = vmul.f32 %v161, 0.6931472
    %v163 = vadd.f32 %v123, %v162
    %v164 = vsel %vm159, %v163, 0.0
    %vm165 = vcmask 7168
    %v166 = vsel %vm165, %v164, 0.0
    %167 = vadd.xlane.f32.xlu0 %v166
    %v168 = vpop.xlane.xlu0 %167
    %v169 = vrot.slane %v168, 4
    %v170 = vadd.f32 %v168, %v169
    %v171 = vrot.slane %v170, 2
    %v172 = vadd.f32 %v170, %v171
    %v173 = vrot.slane %v172, 1
    %v174 = vadd.f32 %v172, %v173
    %s175 = vtos %v174
    %vm176 = vcmp.eq.f32.partialorder %v19, 0.0
    %vm177 = vcmp.lt.f32.partialorder %v20, %v157
    %vm178 = vmand %vm176, %vm177
    %v179 = vsel %vm178, %v112, 0.0
    %v180 = vsel %vm98, %v179, 0.0
    %181 = vadd.xlane.f32.xlu0 %v180
    %v182 = vpop.xlane.xlu0 %181
    %v183 = vrot.slane %v182, 4
    %v184 = vadd.f32 %v182, %v183
    %v185 = vrot.slane %v184, 2
    %v186 = vadd.f32 %v184, %v185
    %v187 = vrot.slane %v186, 1
    %v188 = vadd.f32 %v186, %v187
    %s189 = vtos %v188
    %v190 = vsel %vm178, 1, 0
    %v191 = vcvt.s32.f32 %v190
    %v192 = vsel %vm98, %v191, 0.0
    %193 = vadd.xlane.f32.xlu0 %v192
    %v194 = vpop.xlane.xlu0 %193
    %v195 = vrot.slane %v194, 4
    %v196 = vadd.f32 %v194, %v195
    %v197 = vrot.slane %v196, 2
    %v198 = vadd.f32 %v196, %v197
    %v199 = vrot.slane %v198, 1
    %v200 = vadd.f32 %v198, %v199
    %s201 = vtos %v200
    %s202 = smax.f32 %s201, 1.0
    %p203 = scmp.gt.f32.partialorder %s201, 0.0
    %s204 = ssub.f32 %s175, %s189
    %v205 = vstv %s202
    %v206 = vrcp.pop %v205
    %s207 = vtos %v206
    %s208 = smul.f32 %s204, %s207
    %s209 = scalar_select %p203, %s208, 0.0
    %s210 = smul.f32 %s209, 0.5
    %s211 = sadd.f32 %s111, %s210
    %s212 = scalar_lea.smem [#allocation2], 0
    %213 = sst [smem:[%s212]] %s211
    // Predicated region
    $region18: #{tpu_custom_call.1} parent=1 // pred_check
      _
    $region19: #{tpu_custom_call.1} parent=1 // pred_check_branch
      %215 = sbr.rel (0) target = $region21
    $region20: #{tpu_custom_call.1} parent=1 // pred_region
      %s217 = ssub.s32 16, 16
      %218 = vsyncadd [#allocation3], %s217
      %221 = dma.smem_to_hbm [#allocation2], 16, %s4, [#allocation3]
    $region21: #{tpu_custom_call.1} parent=1 // pred_fallthru
      _
    // Predicated region
    $region22: #{tpu_custom_call.1} parent=1 // pred_check
      _
    $region23: #{tpu_custom_call.1} parent=1 // pred_check_branch
      %223 = sbr.rel (0) target = $region25
    $region24: #{tpu_custom_call.1} parent=1 // pred_region
      %224 = dma.done [#allocation3], 16
    $region25: #{tpu_custom_call.1} parent=1 // pred_fallthru
      _
    %225 = sfence
    %226 = vsyncpa [#allocation3], 1

</llo_original>
